<compile_context>
chip_gen: v5e
topology: v5e:2x2
jax: 0.10.0
libtpu: 0.0.40
codegen_flags: <defaults>
</compile_context>

<pallas_src>
import jax
import jax.numpy as jnp
from jax.experimental import pallas as pl
from jax.experimental.pallas import tpu as pltpu


# ---------------------------------------------------------------------------
# Kernels
# ---------------------------------------------------------------------------

def _gcn_agg_first_kernel(adj_ref, feat_ref, wt_ref, b_ref, out_ref, acc_ref):
    """acc += adj[i, k] @ feat[k]; last k step: out = acc @ Wt + b."""
    k = pl.program_id(1)

    @pl.when(k == 0)
    def _init():
        acc_ref[...] = jnp.zeros_like(acc_ref)

    a = adj_ref[...]
    f = feat_ref[...]
    ct = jnp.promote_types(a.dtype, f.dtype)
    acc_ref[...] += jnp.dot(a.astype(ct), f.astype(ct),
                            preferred_element_type=jnp.float32)

    @pl.when(k == pl.num_programs(1) - 1)
    def _finalize():
        # Upcast the (invariant) weight tile to f32 rather than downcasting
        # the accumulator: keeps full f32 accuracy on the bf16 path.
        proj = jnp.dot(acc_ref[...], wt_ref[...].astype(jnp.float32),
                       preferred_element_type=jnp.float32)       # (tm, F_out)
        out_ref[...] = (proj + b_ref[...]).astype(out_ref.dtype)


def _gcn_preproj_kernel(adj_ref, xwt_ref, b_ref, out_ref, acc_ref):
    """XWt precomputed in wrapper.  acc += adj[i, k] @ xwt[k]; last: out=acc+b."""
    k = pl.program_id(1)

    @pl.when(k == 0)
    def _init():
        acc_ref[...] = jnp.zeros_like(acc_ref)

    a = adj_ref[...]
    x = xwt_ref[...]
    ct = jnp.promote_types(a.dtype, x.dtype)
    acc_ref[...] += jnp.dot(a.astype(ct), x.astype(ct),
                            preferred_element_type=jnp.float32)

    @pl.when(k == pl.num_programs(1) - 1)
    def _finalize():
        out_ref[...] = (acc_ref[...] + b_ref[...]).astype(out_ref.dtype)


# ---------------------------------------------------------------------------
# Generation-aware tiling helpers
# ---------------------------------------------------------------------------

def _vmem_capacity_bytes():
    """Physical VMEM per core; conservative 64 MiB fallback (v7x-class)."""
    try:
        info = pltpu.get_tpu_info()
        cap = getattr(info, "vmem_capacity_bytes", None)
        if cap:
            return int(cap)
    except Exception:
        pass
    return 64 * 1024 * 1024


def _pick_tiles(n, tm, tk, *, adj_bytes, stream_w, stream_bytes, fixed_bytes,
                f_out, out_bytes, acc_w, budget, prefer_two_row_steps):
    """Pick (tm, tk) from {1024,512,256,128} (or full N) under a VMEM model."""
    cand_tm = ([tm] if tm is not None
               else ([c for c in (1024, 512, 256, 128) if n % c == 0] or [n]))
    cand_tk = ([tk] if tk is not None
               else ([c for c in (1024, 512, 256, 128) if n % c == 0] or [n]))

    def need(cm, ck):
        return (2 * cm * ck * adj_bytes            # adj tile, double-buffered
                + 2 * ck * stream_w * stream_bytes  # feat / xwt slab, dbl-buf
                + fixed_bytes                       # resident weight + bias
                + 2 * cm * f_out * out_bytes        # out tile, dbl-buf
                + cm * acc_w * 4)                   # f32 accumulator

    fitting = [(cm, ck) for cm in cand_tm for ck in cand_tk
               if need(cm, ck) <= budget]
    if not fitting:
        return min(cand_tm), min(cand_tk)

    def key(p):
        cm, ck = p
        two_ok = (n // cm >= 2) or (not prefer_two_row_steps)
        return (two_ok, cm * ck, ck)   # steps for dual-TC, then biggest tiles

    return max(fitting, key=key)


# ---------------------------------------------------------------------------
# Wrapper
# ---------------------------------------------------------------------------

def graph_convolution(adj, features, weight, bias, *, tm=None, tk=None,
                      compute_dtype=None, cast_adj=False,
                      vmem_limit_bytes=None):
    """GCN layer: (adj @ features) @ weight.T + bias.

    adj: (N, N), features: (N, F_in), weight: (F_out, F_in) [nn.Linear layout],
    bias: (F_out,).  Returns (N, F_out) in the original features dtype.

    compute_dtype: optional (e.g. jnp.bfloat16) — casts features/weight only;
    adj is left untouched unless cast_adj=True (casting a one-shot f32 adj
    would *add* HBM traffic on the dominant stream).  Accumulation is f32.
    """
    N = adj.shape[0]
    F_in = features.shape[1]
    F_out = weight.shape[0]
    out_dtype = features.dtype

    if compute_dtype is not None:
        features = features.astype(compute_dtype)
        weight = weight.astype(compute_dtype)
        if cast_adj:
            adj = adj.astype(compute_dtype)

    # One-time XLA-side transpose: (F_out, F_in) -> (F_in, F_out).
    wt = weight.T
    bias2d = bias.reshape(1, F_out).astype(jnp.float32)

    # --- Generation-aware VMEM budget -------------------------------------
    cap = _vmem_capacity_bytes()
    budget = (vmem_limit_bytes if vmem_limit_bytes is not None
              else min((cap * 3) // 4, 96 * 1024 * 1024))
    prefer_two_row_steps = cap < (100 << 20)   # v7x-class (2 TCs, 64 MiB VMEM)

    # --- Matmul-order dispatch (lane-density + VMEM aware) -----------------
    if F_in < 128 <= F_out:
        use_preproj = True                      # keep streamed width >= 128
    elif F_out < 128 <= F_in:
        use_preproj = False
    else:
        use_preproj = F_out < F_in              # smaller accumulator
    w_itemsize = jnp.dtype(wt.dtype).itemsize
    if (not use_preproj) and 2 * F_in * F_out * w_itemsize > budget // 2:
        use_preproj = True                      # weight block would eat VMEM

    adj_bytes = jnp.dtype(adj.dtype).itemsize
    out_bytes = jnp.dtype(out_dtype).itemsize

    if use_preproj:
        # Single XLA matmul over (N, F_in) x (F_in, F_out): done ONCE, not once
        # per row tile as in the old project-first kernel.
        xwt = jnp.dot(features, wt)             # (N, F_out)
        stream, stream_w = xwt, F_out
        stream_bytes = jnp.dtype(xwt.dtype).itemsize
        acc_w = F_out
        fixed_bytes = 2 * F_out * 4             # bias
        kernel = _gcn_preproj_kernel
    else:
        stream, stream_w = features, F_in
        stream_bytes = jnp.dtype(features.dtype).itemsize
        acc_w = F_in
        fixed_bytes = 2 * F_in * F_out * w_itemsize + 2 * F_out * 4
        kernel = _gcn_agg_first_kernel

    tm, tk = _pick_tiles(N, tm, tk,
                         adj_bytes=adj_bytes, stream_w=stream_w,
                         stream_bytes=stream_bytes, fixed_bytes=fixed_bytes,
                         f_out=F_out, out_bytes=out_bytes, acc_w=acc_w,
                         budget=budget,
                         prefer_two_row_steps=prefer_two_row_steps)
    assert N % tm == 0 and N % tk == 0, "N must be divisible by tm and tk"

    grid = (N // tm, N // tk)

    if use_preproj:
        in_specs = [
            pl.BlockSpec((tm, tk), lambda i, k: (i, k)),        # adj (streamed)
            pl.BlockSpec((tk, F_out), lambda i, k: (k, 0)),     # xwt K-slab
            pl.BlockSpec((1, F_out), lambda i, k: (0, 0)),      # bias (invariant)
        ]
        args = (adj, stream, bias2d)
    else:
        in_specs = [
            pl.BlockSpec((tm, tk), lambda i, k: (i, k)),        # adj (streamed)
            pl.BlockSpec((tk, F_in), lambda i, k: (k, 0)),      # features K-slab
            pl.BlockSpec((F_in, F_out), lambda i, k: (0, 0)),   # weight.T (invariant)
            pl.BlockSpec((1, F_out), lambda i, k: (0, 0)),      # bias (invariant)
        ]
        args = (adj, stream, wt, bias2d)

    return pl.pallas_call(
        kernel,
        out_shape=jax.ShapeDtypeStruct((N, F_out), out_dtype),
        grid_spec=pltpu.PrefetchScalarGridSpec(
            num_scalar_prefetch=0,
            grid=grid,
            in_specs=in_specs,
            out_specs=pl.BlockSpec((tm, F_out), lambda i, k: (i, 0)),
            scratch_shapes=[pltpu.VMEM((tm, acc_w), jnp.float32)],
        ),
        compiler_params=pltpu.CompilerParams(
            dimension_semantics=("parallel", "arbitrary"),
            vmem_limit_bytes=budget),
    )(*args)


# ---------------------------------------------------------------------------
# Self-test
# ---------------------------------------------------------------------------

if __name__ == "__main__":
    # Small, TPU-tile-friendly sizes.
    N, F_IN, F_OUT = 256, 64, 128

    key = jax.random.PRNGKey(0)
    k_adj, k_feat, k_w, k_b = jax.random.split(key, 4)

    # Synthetic symmetric, row-normalized adjacency (deterministic).
    raw = (jax.random.uniform(k_adj, (N, N)) < 0.05).astype(jnp.float32)
    adj = raw + raw.T + jnp.eye(N, dtype=jnp.float32)
    adj = adj / jnp.sum(adj, axis=1, keepdims=True)

    features = jax.random.normal(k_feat, (N, F_IN), dtype=jnp.float32)

    # nn.Linear(F_IN, F_OUT) parameters: uniform(-1/sqrt(F_IN), 1/sqrt(F_IN)).
    bound = 1.0 / (F_IN ** 0.5)
    weight = jax.random.uniform(k_w, (F_OUT, F_IN), minval=-bound, maxval=bound,
                                dtype=jnp.float32)
    bias = jax.random.uniform(k_b, (F_OUT,), minval=-bound, maxval=bound,
                              dtype=jnp.float32)

    ref = (adj @ features) @ weight.T + bias

    # 1) f32, explicit 128x128 tiles (pre-projected path: F_in=64 < 128 <= F_out).
    out_f32 = graph_convolution(adj, features, weight, bias, tm=128, tk=128)
    out_f32 = jax.block_until_ready(out_f32)
    assert out_f32.shape == (N, F_OUT)
    assert jnp.allclose(out_f32, ref, atol=1e-4, rtol=1e-4)

    # 2) bf16 compute path (features/weight only; adj stays f32), auto tiles.
    out_bf16 = graph_convolution(adj, features, weight, bias,
                                 compute_dtype=jnp.bfloat16)
    out_bf16 = jax.block_until_ready(out_bf16)
    assert out_bf16.shape == (N, F_OUT)
    assert jnp.allclose(out_bf16.astype(jnp.float32), ref, atol=3e-2, rtol=3e-2)

    # 3) aggregate-first path (F_out=64 < 128 <= F_in): keeps streamed/acc
    #    width at 128 (lane-dense), weight applied once per row tile.
    F_IN2, F_OUT2 = 128, 64
    k_f2, k_w2, k_b2 = jax.random.split(k_b, 3)
    features2 = jax.random.normal(k_f2, (N, F_IN2), dtype=jnp.float32)
    bound2 = 1.0 / (F_IN2 ** 0.5)
    weight2 = jax.random.uniform(k_w2, (F_OUT2, F_IN2), minval=-bound2,
                                 maxval=bound2, dtype=jnp.float32)
    bias2 = jax.random.uniform(k_b2, (F_OUT2,), minval=-bound2, maxval=bound2,
                               dtype=jnp.float32)
    ref2 = (adj @ features2) @ weight2.T + bias2
    out2 = graph_convolution(adj, features2, weight2, bias2, tm=128, tk=128)
    out2 = jax.block_until_ready(out2)
    assert out2.shape == (N, F_OUT2)
    assert jnp.allclose(out2, ref2, atol=1e-4, rtol=1e-4)

    print("KERNEL_OK")
</pallas_src>

<mosaic_0001>
module attributes {stable_mosaic.version = 11 : i64} {
  func.func @_gcn_preproj_kernel(%arg0: i32, %arg1: i32, %arg2: memref<128x128xf32, #tpu.memory_space<vmem>>, %arg3: memref<128x128xf32, #tpu.memory_space<vmem>>, %arg4: memref<1x128xf32, #tpu.memory_space<vmem>>, %arg5: memref<128x128xf32, #tpu.memory_space<vmem>>, %arg6: memref<128x128xf32, #tpu.memory_space<vmem>>) attributes {dimension_semantics = [#tpu.dimension_semantics<parallel>, #tpu.dimension_semantics<arbitrary>], iteration_bounds = array<i64: 2, 2>, scalar_prefetch = 0 : i64, scratch_operands = 1 : i64, tpu.core_type = #tpu.core_type<tc>, window_params = [{transform_indices = @transform_0, window_bounds = array<i64: 128, 128>}, {transform_indices = @transform_1, window_bounds = array<i64: 128, 128>}, {pipeline_mode = #tpu.pipeline_mode<synchronous>, transform_indices = @transform_2, window_bounds = array<i64: 1, 128>}, {transform_indices = @transform_3, window_bounds = array<i64: 128, 128>}]} {
    %c0_i32 = arith.constant 0 : i32
    %0 = arith.cmpi eq, %arg1, %c0_i32 : i32
    %1 = arith.extui %0 : i1 to i32
    %c0_i32_0 = arith.constant 0 : i32
    %2 = arith.cmpi ne, %1, %c0_i32_0 : i32
    scf.if %2 {
      %cst_9 = arith.constant 0.000000e+00 : f32
      %12 = vector.broadcast %cst_9 : f32 to vector<128x128xf32>
      %c0_10 = arith.constant 0 : index
      %c0_11 = arith.constant 0 : index
      %13 = vector.load %arg6[%c0_10, %c0_11] : memref<128x128xf32, #tpu.memory_space<vmem>>, vector<128x128xf32>
      tpu.vector_store %arg6[%c0_10, %c0_11], %12 {strides = array<i32>} : memref<128x128xf32, #tpu.memory_space<vmem>>, vector<128x128xf32>,
    } else {
    }
    %c0 = arith.constant 0 : index
    %c0_1 = arith.constant 0 : index
    %3 = vector.load %arg2[%c0, %c0_1] : memref<128x128xf32, #tpu.memory_space<vmem>>, vector<128x128xf32>
    %c0_2 = arith.constant 0 : index
    %c0_3 = arith.constant 0 : index
    %4 = vector.load %arg3[%c0_2, %c0_3] : memref<128x128xf32, #tpu.memory_space<vmem>>, vector<128x128xf32>
    %c0_4 = arith.constant 0 : index
    %c0_5 = arith.constant 0 : index
    %5 = vector.load %arg6[%c0_4, %c0_5] : memref<128x128xf32, #tpu.memory_space<vmem>>, vector<128x128xf32>
    %cst = arith.constant dense<0.000000e+00> : vector<128x128xf32>
    %6 = tpu.matmul %3, %4, %cst {dimension_numbers = #tpu.dot_dimension_numbers<[1], [0], [0], [1], [0, 0, 1, 1], [], []>} : vector<128x128xf32>, vector<128x128xf32>, vector<128x128xf32> -> vector<128x128xf32>
    %7 = arith.addf %5, %6 : vector<128x128xf32>
    %c0_6 = arith.constant 0 : index
    %c0_7 = arith.constant 0 : index
    %8 = vector.load %arg6[%c0_6, %c0_7] : memref<128x128xf32, #tpu.memory_space<vmem>>, vector<128x128xf32>
    tpu.vector_store %arg6[%c0_6, %c0_7], %7 {strides = array<i32>} : memref<128x128xf32, #tpu.memory_space<vmem>>, vector<128x128xf32>,
    %c1_i32 = arith.constant 1 : i32
    %9 = arith.cmpi eq, %arg1, %c1_i32 : i32
    %10 = arith.extui %9 : i1 to i32
    %c0_i32_8 = arith.constant 0 : i32
    %11 = arith.cmpi ne, %10, %c0_i32_8 : i32
    scf.if %11 {
      %c0_9 = arith.constant 0 : index
      %c0_10 = arith.constant 0 : index
      %12 = vector.load %arg6[%c0_9, %c0_10] : memref<128x128xf32, #tpu.memory_space<vmem>>, vector<128x128xf32>
      %c0_11 = arith.constant 0 : index
      %c0_12 = arith.constant 0 : index
      %13 = vector.load %arg4[%c0_11, %c0_12] : memref<1x128xf32, #tpu.memory_space<vmem>>, vector<1x128xf32>
      %14 = vector.broadcast %13 : vector<1x128xf32> to vector<128x128xf32>
      %15 = arith.addf %12, %14 : vector<128x128xf32>
      %c0_13 = arith.constant 0 : index
      %c0_14 = arith.constant 0 : index
      %16 = vector.load %arg5[%c0_13, %c0_14] : memref<128x128xf32, #tpu.memory_space<vmem>>, vector<128x128xf32>
      tpu.vector_store %arg5[%c0_13, %c0_14], %15 {strides = array<i32>} : memref<128x128xf32, #tpu.memory_space<vmem>>, vector<128x128xf32>,
    } else {
    }
    return
  }
  func.func @transform_0(%arg0: i32, %arg1: i32) -> (i32, i32) {
    %c0_i32 = arith.constant 0 : i32
    return %arg0, %arg1 : i32, i32
  }
  func.func @transform_1(%arg0: i32, %arg1: i32) -> (i32, i32) {
    %c0_i32 = arith.constant 0 : i32
    %c0_i32_0 = arith.constant 0 : i32
    return %arg1, %c0_i32 : i32, i32
  }
  func.func @transform_2(%arg0: i32, %arg1: i32) -> (i32, i32) {
    %c0_i32 = arith.constant 0 : i32
    %c0_i32_0 = arith.constant 0 : i32
    %c0_i32_1 = arith.constant 0 : i32
    return %c0_i32, %c0_i32_0 : i32, i32
  }
  func.func @transform_3(%arg0: i32, %arg1: i32) -> (i32, i32) {
    %c0_i32 = arith.constant 0 : i32
    %c0_i32_0 = arith.constant 0 : i32
    return %arg0, %c0_i32 : i32, i32
  }
}

</mosaic_0001>

<llo_original>
// kernel: tpu_custom_call.1
$region0: #{tpu_custom_call.1}
  #allocation0 [shape = 'u32[]', space=smem, size = 0x4, offset = 0x4, fixed_abs, tag = 'smem constant byte address 0x4 - core index']
  #allocation1 [shape = 'u32[72,128]{1,0:T(1,128)}', space=vmem, size = 0x9000, scoped, tag = 'internal scratch']
  #allocation2 [shape = 'f32[128,128]{1,0:T(8,128)}', space=vmem, size = 0x10000, scoped, tag = 'scratch operand']
  %s0 = inlined_call_operand.hbm [shape: f32[256,256], index: 0, kind: input, shape index: {}]
  %s1 = inlined_call_operand.hbm [shape: f32[256,128], index: 1, kind: input, shape index: {}]
  %s2 = inlined_call_operand.vmem [shape: f32[1,128], index: 2, kind: input, shape index: {}]
  %s3 = inlined_call_operand.hbm [shape: f32[256,128], index: 3, kind: output, shape index: {}]
  %s4 = sld [smem:[#allocation0]]
  $region61: #{tpu_custom_call.1} parent=0
    _
  %s6 = ssub.s32 1, %s4
  %s7 = scalar_select 0, %s6, %s4
  $region1: #{tpu_custom_call.1} parent=0
    #allocation3 [shape = 'u8[131072]{0}', space=vmem, size = 0x20000, scoped, tag = 'input window, operand 0']
    #allocation4 [shape = 's32[2]{0}', space=sflag, size = 0x8, scoped, tag = 'scoped memory for tpu_custom_call.1']
    #allocation5 [shape = 's32[2]{0}', space=sflag, size = 0x8, scoped, tag = 'scoped memory for tpu_custom_call.1']
    #allocation6 [shape = 'u8[131072]{0}', space=vmem, size = 0x20000, scoped, tag = 'input window, operand 1']
    #allocation7 [shape = 's32[2]{0}', space=sflag, size = 0x8, scoped, tag = 'scoped memory for tpu_custom_call.1']
    #allocation8 [shape = 'u8[131072]{0}', space=vmem, size = 0x20000, scoped, tag = 'output window, operand 0']
    %8 = vsyncpa [#allocation4], 0
    %s9 = scalar_lea.sflag [#allocation4], 1
    %10 = vsyncpa %s9, 0
    %11 = vsyncpa [#allocation7], 0
    %s12 = scalar_lea.sflag [#allocation7], 1
    %13 = vsyncpa %s12, 0
    %14 = vsyncpa [#allocation5], 0
    %s15 = scalar_lea.sflag [#allocation5], 1
    %16 = vsyncpa %s15, 0
    loop: start=0, step=1, limit=6
    $region2: #{tpu_custom_call.1} parent=1 // loop_pre_header
      _
    $region3: #{tpu_custom_call.1} parent=1 // loop_header
      %s18 = sphi 0, %s22
      %p19 = scmp.ge.s32.totalorder %s18, 6
      %s25 = sphi 0, %s37
      %s26 = sphi 0, %s33
      %s27 = sphi 0, %s25
      %s28 = sphi 0, %s26
      %s29 = sphi 0, %s27
      %s30 = sphi 0, %s28
      %s42 = sphi 0, %s44
      %s45 = sphi 0, %s42
      %s46 = sphi 0, %s45
      %s62 = sphi 0, %s46
      %s68 = sphi 0, %s70
      %s71 = sphi 0, %s68
      %s72 = sphi 0, %s71
      %s88 = sphi 0, %s72
      %s92 = sphi 0, %s92
      %s94 = sphi 0, %s92
      %s95 = sphi 0, %s94
      %s109 = sphi 0, %s95
      %s115 = sphi 0, %s117
      %s118 = sphi 0, %s115
      %s119 = sphi 0, %s118
      %s135 = sphi 0, %s119
    $region4: #{tpu_custom_call.1} parent=1 // loop_header_branch
      %21 = sbr.rel (%p19) target = $region8
    $region5: #{tpu_custom_call.1} parent=1 // loop_body
      %s23 = ssub.s32 %s18, 1
      %s24 = ssub.s32 %s18, 2
      %s31 = sadd.s32 1, %s26
      %p32 = scmp.ge.s32.totalorder %s31, 2
      %s33 = scalar_select %p32, 0, %s31
      %s34 = sadd.s32 1, %s25
      %s35 = scalar_select %p32, %s34, %s25
      %p36 = scmp.ge.s32.totalorder %s35, 2
      %s37 = scalar_select %p36, 0, %s35
      %s38 = ssub.s32 %s25, %s37
      %s39 = ssub.s32 %s26, %s33
      %s40 = sor.u32 %s38, %s39
      %p41 = scmp.eq.s32.totalorder %s40, 0
      %s43 = sadd.s32 %s42, 1
      %s44 = scalar_select %p41, %s42, %s43
      %p47 = pneg %p41
      %p48 = scmp.eq.s32.totalorder %s18, 3
      %p49 = por %p47, %p48
      %p50 = scmp.ne.s32.totalorder %s42, %s45
      %p51 = scmp.eq.s32.totalorder %s18, 0
      %p52 = por %p50, %p51
      %p53 = scmp.ne.s32.totalorder %s42, %s45
      %p54 = scmp.eq.s32.totalorder %s23, 3
      %p55 = por %p53, %p54
      %p56 = scmp.ne.s32.totalorder %s45, %s46
      %p57 = scmp.eq.s32.totalorder %s23, 0
      %p58 = por %p56, %p57
      %p59 = scmp.ne.s32.totalorder %s45, %s46
      %p60 = scmp.eq.s32.totalorder %s24, 3
      %p61 = por %p59, %p60
      %p63 = scmp.ne.s32.totalorder %s46, %s62
      %p64 = scmp.eq.s32.totalorder %s24, 0
      %p65 = por %p63, %p64
      %s66 = ssub.s32 %s26, %s33
      %p67 = scmp.eq.s32.totalorder %s66, 0
      %s69 = sadd.s32 %s68, 1
      %s70 = scalar_select %p67, %s68, %s69
      %p73 = pneg %p67
      %p74 = scmp.eq.s32.totalorder %s18, 3
      %p75 = por %p73, %p74
      %p76 = scmp.ne.s32.totalorder %s68, %s71
      %p77 = scmp.eq.s32.totalorder %s18, 0
      %p78 = por %p76, %p77
      %p79 = scmp.ne.s32.totalorder %s68, %s71
      %p80 = scmp.eq.s32.totalorder %s23, 3
      %p81 = por %p79, %p80
      %p82 = scmp.ne.s32.totalorder %s71, %s72
      %p83 = scmp.eq.s32.totalorder %s23, 0
      %p84 = por %p82, %p83
      %p85 = scmp.ne.s32.totalorder %s71, %s72
      %p86 = scmp.eq.s32.totalorder %s24, 3
      %p87 = por %p85, %p86
      %p89 = scmp.ne.s32.totalorder %s72, %s88
      %p90 = scmp.eq.s32.totalorder %s24, 0
      %p91 = por %p89, %p90
      %s93 = sadd.s32 %s92, 1
      %p96 = scmp.eq.s32.totalorder %s18, 3
      %p97 = scmp.ne.s32.totalorder %s92, %s94
      %p98 = scmp.eq.s32.totalorder %s18, 0
      %p99 = por %p97, %p98
      %p100 = scmp.ne.s32.totalorder %s92, %s94
      %p101 = scmp.eq.s32.totalorder %s23, 3
      %p102 = por %p100, %p101
      %p103 = scmp.ne.s32.totalorder %s94, %s95
      %p104 = scmp.eq.s32.totalorder %s23, 0
      %p105 = por %p103, %p104
      %p106 = scmp.ne.s32.totalorder %s94, %s95
      %p107 = scmp.eq.s32.totalorder %s24, 3
      %p108 = por %p106, %p107
      %p110 = scmp.ne.s32.totalorder %s95, %s109
      %p111 = scmp.eq.s32.totalorder %s24, 0
      %p112 = por %p110, %p111
      %s113 = ssub.s32 %s25, %s37
      %p114 = scmp.eq.s32.totalorder %s113, 0
      %s116 = sadd.s32 %s115, 1
      %s117 = scalar_select %p114, %s115, %s116
      %p120 = pneg %p114
      %p121 = scmp.eq.s32.totalorder %s18, 3
      %p122 = por %p120, %p121
      %p123 = scmp.ne.s32.totalorder %s115, %s118
      %p124 = scmp.eq.s32.totalorder %s18, 0
      %p125 = por %p123, %p124
      %p126 = scmp.ne.s32.totalorder %s115, %s118
      %p127 = scmp.eq.s32.totalorder %s23, 3
      %p128 = por %p126, %p127
      %p129 = scmp.ne.s32.totalorder %s118, %s119
      %p130 = scmp.eq.s32.totalorder %s23, 0
      %p131 = por %p129, %p130
      %p132 = scmp.ne.s32.totalorder %s118, %s119
      %p133 = scmp.eq.s32.totalorder %s24, 3
      %p134 = por %p132, %p133
      %p136 = scmp.ne.s32.totalorder %s119, %s135
      %p137 = scmp.eq.s32.totalorder %s24, 0
      %p138 = por %p136, %p137
      %p139 = scmp.le.s32.totalorder 1, %s18
      %p140 = scmp.lt.s32.totalorder %s18, 5
      %p141 = pnand %p139, %p140
      %p142 = pneg %p141
      // Predicated region
      $region9: #{tpu_custom_call.1} parent=5 // pred_check
        _
      $region10: #{tpu_custom_call.1} parent=5 // pred_check_branch
        %144 = sbr.rel (%p141) target = $region12
      $region11: #{tpu_custom_call.1} parent=5 // pred_region
        %s145 = ssub.s32 %s18, 1
        // Predicated region
        $region13: #{tpu_custom_call.1} parent=11 // pred_check
          %p146 = pneg %p105
        $region14: #{tpu_custom_call.1} parent=11 // pred_check_branch
          %148 = sbr.rel (%p146) target = $region16
        $region15: #{tpu_custom_call.1} parent=11 // pred_region
          _
        $region16: #{tpu_custom_call.1} parent=11 // pred_fallthru
          _
      $region12: #{tpu_custom_call.1} parent=5 // pred_fallthru
        _
      %p149 = scmp.lt.s32.totalorder %s18, 4
      // Predicated region
      $region17: #{tpu_custom_call.1} parent=5 // pred_check
        %p150 = pneg %p149
      $region18: #{tpu_custom_call.1} parent=5 // pred_check_branch
        %152 = sbr.rel (%p150) target = $region20
      $region19: #{tpu_custom_call.1} parent=5 // pred_region
        // Predicated region
        $region21: #{tpu_custom_call.1} parent=19 // pred_check
          %p153 = pneg %p52
        $region22: #{tpu_custom_call.1} parent=19 // pred_check_branch
          %155 = sbr.rel (%p153) target = $region24
        $region23: #{tpu_custom_call.1} parent=19 // pred_region
          %s156 = sand.u32 %s42, 1
          %s157 = scalar_lea.sflag [#allocation4], %s156
          %s158 = sand.u32 %s42, 1
          %s159 = smul.addr %s158, 128
          %s160 = scalar_lea.vmem [#allocation3], %s159
          %s161 = smul.u32 16, %s25
          %163 = vsyncadd %s157, 0
          %s164 = smul.addr %s161, 2
          %s165 = sadd.s32 %s26, %s164
          %s166 = smul.addr %s165, 8
          %s167 = scalar_lea.hbm %s0, %s166
          %s168 = sshll.u32 %s167, 4
          %s169 = int_to_ptr.hbm [resolvable:$true] %s168
          %s170 = sshll.u32 %s160, 4
          %s171 = int_to_ptr.vmem [resolvable:$true] %s170
          %176 = dma.hbm_to_vmem [thread:$0]  %s169, 2048, %s171, %s157, 256, 128, 8
        $region24: #{tpu_custom_call.1} parent=19 // pred_fallthru
          _
        // Predicated region
        $region25: #{tpu_custom_call.1} parent=19 // pred_check
          %p177 = pneg %p78
        $region26: #{tpu_custom_call.1} parent=19 // pred_check_branch
          %179 = sbr.rel (%p177) target = $region28
        $region27: #{tpu_custom_call.1} parent=19 // pred_region
          %s180 = sand.u32 %s68, 1
          %s181 = scalar_lea.sflag [#allocation7], %s180
          %s182 = sand.u32 %s68, 1
          %s183 = smul.addr %s182, 128
          %s184 = scalar_lea.vmem [#allocation6], %s183
          %s185 = smul.u32 16, %s26
          %187 = vsyncadd %s181, 0
          %s188 = smul.addr %s185, 8
          %s189 = scalar_lea.hbm %s1, %s188
          %s190 = sshll.u32 %s189, 4
          %s191 = int_to_ptr.hbm [resolvable:$true] %s190
          %s192 = sshll.u32 %s184, 4
          %s193 = int_to_ptr.vmem [resolvable:$true] %s192
          %198 = dma.hbm_to_vmem [thread:$0]  %s191, 2048, %s193, %s181, 128, 128, 8
        $region28: #{tpu_custom_call.1} parent=19 // pred_fallthru
          _
      $region20: #{tpu_custom_call.1} parent=5 // pred_fallthru
        _
      %p199 = scmp.le.s32.totalorder 1, %s18
      %p200 = scmp.lt.s32.totalorder %s18, 5
      %p201 = pnand %p199, %p200
      %p202 = pneg %p201
      // Predicated region
      $region29: #{tpu_custom_call.1} parent=5 // pred_check
        _
      $region30: #{tpu_custom_call.1} parent=5 // pred_check_branch
        %204 = sbr.rel (%p201) target = $region32
      $region31: #{tpu_custom_call.1} parent=5 // pred_region
        %s205 = ssub.s32 %s18, 1
        %s206 = sand.u32 %s45, 1
        %s207 = scalar_lea.sflag [#allocation4], %s206
        %s208 = sand.u32 %s45, 1
        %s209 = smul.addr %s208, 128
        %s210 = scalar_lea.vmem [#allocation3], %s209
        // Predicated region
        $region33: #{tpu_custom_call.1} parent=31 // pred_check
          %p211 = pneg %p58
        $region34: #{tpu_custom_call.1} parent=31 // pred_check_branch
          %213 = sbr.rel (%p211) target = $region36
        $region35: #{tpu_custom_call.1} parent=31 // pred_region
          %215 = dma.done %s207, 2048
        $region36: #{tpu_custom_call.1} parent=31 // pred_fallthru
          _
        %s216 = sand.u32 %s71, 1
        %s217 = scalar_lea.sflag [#allocation7], %s216
        %s218 = sand.u32 %s71, 1
        %s219 = smul.addr %s218, 128
        %s220 = scalar_lea.vmem [#allocation6], %s219
        // Predicated region
        $region37: #{tpu_custom_call.1} parent=31 // pred_check
          %p221 = pneg %p84
        $region38: #{tpu_custom_call.1} parent=31 // pred_check_branch
          %223 = sbr.rel (%p221) target = $region40
        $region39: #{tpu_custom_call.1} parent=31 // pred_region
          %225 = dma.done %s217, 2048
        $region40: #{tpu_custom_call.1} parent=31 // pred_fallthru
          _
        %s226 = sand.u32 %s45, 1
        %s227 = scalar_lea.sflag [#allocation4], %s226
        %s228 = sand.u32 %s45, 1
        %s229 = smul.addr %s228, 128
        %s230 = scalar_lea.vmem [#allocation3], %s229
        %p231 = pneg %p58
        %p232 = pneg %p55
        %s233 = sand.u32 %s71, 1
        %s234 = scalar_lea.sflag [#allocation7], %s233
        %s235 = sand.u32 %s71, 1
        %s236 = smul.addr %s235, 128
        %s237 = scalar_lea.vmem [#allocation6], %s236
        %p238 = pneg %p84
        %p239 = pneg %p81
        %p240 = pneg %p105
        %p241 = pneg %p102
        %p242 = pneg %p131
        %p243 = pneg %p128
        %s244 = sand.u32 %s118, 1
        %s245 = scalar_lea.sflag [#allocation5], %s244
        %s246 = sand.u32 %s118, 1
        %s247 = smul.addr %s246, 128
        %s248 = scalar_lea.vmem [#allocation8], %s247
        %s249 = smul.u32 16, %s27
        %s250 = smul.u32 16, %s28
        %s251 = smul.u32 16, %s27
        %p252 = scmp.eq.s32.totalorder %s28, 0
        // Predicated region
        $region41: #{tpu_custom_call.1} parent=31 // pred_check
          %p253 = pneg %p252
        $region42: #{tpu_custom_call.1} parent=31 // pred_check_branch
          %255 = sbr.rel (%p253) target = $region44
        $region43: #{tpu_custom_call.1} parent=31 // pred_region
          %256 = vst [vmem:[#allocation2] sm:$0xff] 0.0
          %257 = vst [vmem:[#allocation2 + $0x8] sm:$0xff] 0.0
          %258 = vst [vmem:[#allocation2 + $0x10] sm:$0xff] 0.0
          %259 = vst [vmem:[#allocation2 + $0x18] sm:$0xff] 0.0
          %260 = vst [vmem:[#allocation2 + $0x20] sm:$0xff] 0.0
          %261 = vst [vmem:[#allocation2 + $0x28] sm:$0xff] 0.0
          %262 = vst [vmem:[#allocation2 + $0x30] sm:$0xff] 0.0
          %263 = vst [vmem:[#allocation2 + $0x38] sm:$0xff] 0.0
          %264 = vst [vmem:[#allocation2 + $0x40] sm:$0xff] 0.0
          %265 = vst [vmem:[#allocation2 + $0x48] sm:$0xff] 0.0
          %266 = vst [vmem:[#allocation2 + $0x50] sm:$0xff] 0.0
          %267 = vst [vmem:[#allocation2 + $0x58] sm:$0xff] 0.0
          %268 = vst [vmem:[#allocation2 + $0x60] sm:$0xff] 0.0
          %269 = vst [vmem:[#allocation2 + $0x68] sm:$0xff] 0.0
          %270 = vst [vmem:[#allocation2 + $0x70] sm:$0xff] 0.0
          %271 = vst [vmem:[#allocation2 + $0x78] sm:$0xff] 0.0
        $region44: #{tpu_custom_call.1} parent=31 // pred_fallthru
          _
        %v272 = vld [vmem:[%s210] sm:$0xff]
        %v273 = vld [vmem:[%s210 + $0x8] sm:$0xff]
        %v274 = vld [vmem:[%s210 + $0x10] sm:$0xff]
        %v275 = vld [vmem:[%s210 + $0x18] sm:$0xff]
        %v276 = vld [vmem:[%s210 + $0x20] sm:$0xff]
        %v277 = vld [vmem:[%s210 + $0x28] sm:$0xff]
        %v278 = vld [vmem:[%s210 + $0x30] sm:$0xff]
        %v279 = vld [vmem:[%s210 + $0x38] sm:$0xff]
        %v280 = vld [vmem:[%s210 + $0x40] sm:$0xff]
        %v281 = vld [vmem:[%s210 + $0x48] sm:$0xff]
        %v282 = vld [vmem:[%s210 + $0x50] sm:$0xff]
        %v283 = vld [vmem:[%s210 + $0x58] sm:$0xff]
        %v284 = vld [vmem:[%s210 + $0x60] sm:$0xff]
        %v285 = vld [vmem:[%s210 + $0x68] sm:$0xff]
        %v286 = vld [vmem:[%s210 + $0x70] sm:$0xff]
        %v287 = vld [vmem:[%s210 + $0x78] sm:$0xff]
        %v288 = vld [vmem:[%s220] sm:$0xff]
        %v289 = vld [vmem:[%s220 + $0x8] sm:$0xff]
        %v290 = vld [vmem:[%s220 + $0x10] sm:$0xff]
        %v291 = vld [vmem:[%s220 + $0x18] sm:$0xff]
        %v292 = vld [vmem:[%s220 + $0x20] sm:$0xff]
        %v293 = vld [vmem:[%s220 + $0x28] sm:$0xff]
        %v294 = vld [vmem:[%s220 + $0x30] sm:$0xff]
        %v295 = vld [vmem:[%s220 + $0x38] sm:$0xff]
        %v296 = vld [vmem:[%s220 + $0x40] sm:$0xff]
        %v297 = vld [vmem:[%s220 + $0x48] sm:$0xff]
        %v298 = vld [vmem:[%s220 + $0x50] sm:$0xff]
        %v299 = vld [vmem:[%s220 + $0x58] sm:$0xff]
        %v300 = vld [vmem:[%s220 + $0x60] sm:$0xff]
        %v301 = vld [vmem:[%s220 + $0x68] sm:$0xff]
        %v302 = vld [vmem:[%s220 + $0x70] sm:$0xff]
        %v303 = vld [vmem:[%s220 + $0x78] sm:$0xff]
        %v304 = vld [vmem:[#allocation2] sm:$0xff]
        %v305 = vld [vmem:[#allocation2 + $0x8] sm:$0xff]
        %v306 = vld [vmem:[#allocation2 + $0x10] sm:$0xff]
        %v307 = vld [vmem:[#allocation2 + $0x18] sm:$0xff]
        %v308 = vld [vmem:[#allocation2 + $0x20] sm:$0xff]
        %v309 = vld [vmem:[#allocation2 + $0x28] sm:$0xff]
        %v310 = vld [vmem:[#allocation2 + $0x30] sm:$0xff]
        %v311 = vld [vmem:[#allocation2 + $0x38] sm:$0xff]
        %v312 = vld [vmem:[#allocation2 + $0x40] sm:$0xff]
        %v313 = vld [vmem:[#allocation2 + $0x48] sm:$0xff]
        %v314 = vld [vmem:[#allocation2 + $0x50] sm:$0xff]
        %v315 = vld [vmem:[#allocation2 + $0x58] sm:$0xff]
        %v316 = vld [vmem:[#allocation2 + $0x60] sm:$0xff]
        %v317 = vld [vmem:[#allocation2 + $0x68] sm:$0xff]
        %v318 = vld [vmem:[#allocation2 + $0x70] sm:$0xff]
        %v319 = vld [vmem:[#allocation2 + $0x78] sm:$0xff]
        %320 = vmatpush.msra.mxu0 %v303
        %321 = vmatpush.msra.mxu0 %v302
        %322 = vmatpush.msra.mxu0 %v301
        %323 = vmatpush.msra.mxu0 %v300
        %324 = vmatpush.msra.mxu0 %v299
        %325 = vmatpush.msra.mxu0 %v298
        %326 = vmatpush.msra.mxu0 %v297
        %327 = vmatpush.msra.mxu0 %v296
        %328 = vmatpush.msra.mxu0 %v295
        %329 = vmatpush.msra.mxu0 %v294
        %330 = vmatpush.msra.mxu0 %v293
        %331 = vmatpush.msra.mxu0 %v292
        %332 = vmatpush.msra.mxu0 %v291
        %333 = vmatpush.msra.mxu0 %v290
        %334 = vmatpush.msra.mxu0 %v289
        %335 = vmatpush.msra.mxu0 %v288
        %336 = vmatmul.f32.gmra.mxu0 %v272
        %v337 = vpop.f32.mrf.mxu0
        %v338 = vadd.f32 0.0, %v337
        %339 = vmatmul.f32.gmra.mxu0 %v273
        %v340 = vpop.f32.mrf.mxu0
        %v341 = vadd.f32 0.0, %v340
        %342 = vmatmul.f32.gmra.mxu0 %v274
        %v343 = vpop.f32.mrf.mxu0
        %v344 = vadd.f32 0.0, %v343
        %345 = vmatmul.f32.gmra.mxu0 %v275
        %v346 = vpop.f32.mrf.mxu0
        %v347 = vadd.f32 0.0, %v346
        %348 = vmatmul.f32.gmra.mxu0 %v276
        %v349 = vpop.f32.mrf.mxu0
        %v350 = vadd.f32 0.0, %v349
        %351 = vmatmul.f32.gmra.mxu0 %v277
        %v352 = vpop.f32.mrf.mxu0
        %v353 = vadd.f32 0.0, %v352
        %354 = vmatmul.f32.gmra.mxu0 %v278
        %v355 = vpop.f32.mrf.mxu0
        %v356 = vadd.f32 0.0, %v355
        %357 = vmatmul.f32.gmra.mxu0 %v279
        %v358 = vpop.f32.mrf.mxu0
        %v359 = vadd.f32 0.0, %v358
        %360 = vmatmul.f32.gmra.mxu0 %v280
        %v361 = vpop.f32.mrf.mxu0
        %v362 = vadd.f32 0.0, %v361
        %363 = vmatmul.f32.gmra.mxu0 %v281
        %v364 = vpop.f32.mrf.mxu0
        %v365 = vadd.f32 0.0, %v364
        %366 = vmatmul.f32.gmra.mxu0 %v282
        %v367 = vpop.f32.mrf.mxu0
        %v368 = vadd.f32 0.0, %v367
        %369 = vmatmul.f32.gmra.mxu0 %v283
        %v370 = vpop.f32.mrf.mxu0
        %v371 = vadd.f32 0.0, %v370
        %372 = vmatmul.f32.gmra.mxu0 %v284
        %v373 = vpop.f32.mrf.mxu0
        %v374 = vadd.f32 0.0, %v373
        %375 = vmatmul.f32.gmra.mxu0 %v285
        %v376 = vpop.f32.mrf.mxu0
        %v377 = vadd.f32 0.0, %v376
        %378 = vmatmul.f32.gmra.mxu0 %v286
        %v379 = vpop.f32.mrf.mxu0
        %v380 = vadd.f32 0.0, %v379
        %381 = vmatmul.f32.gmra.mxu0 %v287
        %v382 = vpop.f32.mrf.mxu0
        %v383 = vadd.f32 0.0, %v382
        %384 = vdwg.mxu0
        %v385 = vadd.f32 %v304, %v338
        %v386 = vadd.f32 %v305, %v341
        %v387 = vadd.f32 %v306, %v344
        %v388 = vadd.f32 %v307, %v347
        %v389 = vadd.f32 %v308, %v350
        %v390 = vadd.f32 %v309, %v353
        %v391 = vadd.f32 %v310, %v356
        %v392 = vadd.f32 %v311, %v359
        %v393 = vadd.f32 %v312, %v362
        %v394 = vadd.f32 %v313, %v365
        %v395 = vadd.f32 %v314, %v368
        %v396 = vadd.f32 %v315, %v371
        %v397 = vadd.f32 %v316, %v374
        %v398 = vadd.f32 %v317, %v377
        %v399 = vadd.f32 %v318, %v380
        %v400 = vadd.f32 %v319, %v383
        %401 = vst [vmem:[#allocation2] sm:$0xff] %v385
        %402 = vst [vmem:[#allocation2 + $0x8] sm:$0xff] %v386
        %403 = vst [vmem:[#allocation2 + $0x10] sm:$0xff] %v387
        %404 = vst [vmem:[#allocation2 + $0x18] sm:$0xff] %v388
        %405 = vst [vmem:[#allocation2 + $0x20] sm:$0xff] %v389
        %406 = vst [vmem:[#allocation2 + $0x28] sm:$0xff] %v390
        %407 = vst [vmem:[#allocation2 + $0x30] sm:$0xff] %v391
        %408 = vst [vmem:[#allocation2 + $0x38] sm:$0xff] %v392
        %409 = vst [vmem:[#allocation2 + $0x40] sm:$0xff] %v393
        %410 = vst [vmem:[#allocation2 + $0x48] sm:$0xff] %v394
        %411 = vst [vmem:[#allocation2 + $0x50] sm:$0xff] %v395
        %412 = vst [vmem:[#allocation2 + $0x58] sm:$0xff] %v396
        %413 = vst [vmem:[#allocation2 + $0x60] sm:$0xff] %v397
        %414 = vst [vmem:[#allocation2 + $0x68] sm:$0xff] %v398
        %415 = vst [vmem:[#allocation2 + $0x70] sm:$0xff] %v399
        %416 = vst [vmem:[#allocation2 + $0x78] sm:$0xff] %v400
        %p417 = scmp.eq.s32.totalorder %s28, 1
        // Predicated region
        $region45: #{tpu_custom_call.1} parent=31 // pred_check
          %p418 = pneg %p417
        $region46: #{tpu_custom_call.1} parent=31 // pred_check_branch
          %420 = sbr.rel (%p418) target = $region48
        $region47: #{tpu_custom_call.1} parent=31 // pred_region
          %v421 = vld [vmem:[#allocation2] sm:$0xff]
          %v422 = vld [vmem:[#allocation2 + $0x8] sm:$0xff]
          %v423 = vld [vmem:[#allocation2 + $0x10] sm:$0xff]
          %v424 = vld [vmem:[#allocation2 + $0x18] sm:$0xff]
          %v425 = vld [vmem:[#allocation2 + $0x20] sm:$0xff]
          %v426 = vld [vmem:[#allocation2 + $0x28] sm:$0xff]
          %v427 = vld [vmem:[#allocation2 + $0x30] sm:$0xff]
          %v428 = vld [vmem:[#allocation2 + $0x38] sm:$0xff]
          %v429 = vld [vmem:[#allocation2 + $0x40] sm:$0xff]
          %v430 = vld [vmem:[#allocation2 + $0x48] sm:$0xff]
          %v431 = vld [vmem:[#allocation2 + $0x50] sm:$0xff]
          %v432 = vld [vmem:[#allocation2 + $0x58] sm:$0xff]
          %v433 = vld [vmem:[#allocation2 + $0x60] sm:$0xff]
          %v434 = vld [vmem:[#allocation2 + $0x68] sm:$0xff]
          %v435 = vld [vmem:[#allocation2 + $0x70] sm:$0xff]
          %v436 = vld [vmem:[#allocation2 + $0x78] sm:$0xff]
          %v437 = vld [vmem:[%s2] sm:$0x1]
          %v439 = vperm.slane %v437, 0
          %v441 = vadd.f32 %v421, %v439
          %v442 = vadd.f32 %v422, %v439
          %v443 = vadd.f32 %v423, %v439
          %v444 = vadd.f32 %v424, %v439
          %v445 = vadd.f32 %v425, %v439
          %v446 = vadd.f32 %v426, %v439
          %v447 = vadd.f32 %v427, %v439
          %v448 = vadd.f32 %v428, %v439
          %v449 = vadd.f32 %v429, %v439
          %v450 = vadd.f32 %v430, %v439
          %v451 = vadd.f32 %v431, %v439
          %v452 = vadd.f32 %v432, %v439
          %v453 = vadd.f32 %v433, %v439
          %v454 = vadd.f32 %v434, %v439
          %v455 = vadd.f32 %v435, %v439
          %v456 = vadd.f32 %v436, %v439
          %457 = vst [vmem:[%s248] sm:$0xff] %v441
          %458 = vst [vmem:[%s248 + $0x8] sm:$0xff] %v442
          %459 = vst [vmem:[%s248 + $0x10] sm:$0xff] %v443
          %460 = vst [vmem:[%s248 + $0x18] sm:$0xff] %v444
          %461 = vst [vmem:[%s248 + $0x20] sm:$0xff] %v445
          %462 = vst [vmem:[%s248 + $0x28] sm:$0xff] %v446
          %463 = vst [vmem:[%s248 + $0x30] sm:$0xff] %v447
          %464 = vst [vmem:[%s248 + $0x38] sm:$0xff] %v448
          %465 = vst [vmem:[%s248 + $0x40] sm:$0xff] %v449
          %466 = vst [vmem:[%s248 + $0x48] sm:$0xff] %v450
          %467 = vst [vmem:[%s248 + $0x50] sm:$0xff] %v451
          %468 = vst [vmem:[%s248 + $0x58] sm:$0xff] %v452
          %469 = vst [vmem:[%s248 + $0x60] sm:$0xff] %v453
          %470 = vst [vmem:[%s248 + $0x68] sm:$0xff] %v454
          %471 = vst [vmem:[%s248 + $0x70] sm:$0xff] %v455
          %472 = vst [vmem:[%s248 + $0x78] sm:$0xff] %v456
        $region48: #{tpu_custom_call.1} parent=31 // pred_fallthru
          _
        %s473 = sand.u32 %s118, 1
        %s474 = scalar_lea.sflag [#allocation5], %s473
        %s475 = sand.u32 %s118, 1
        %s476 = smul.addr %s475, 128
        %s477 = scalar_lea.vmem [#allocation8], %s476
        // Predicated region
        $region49: #{tpu_custom_call.1} parent=31 // pred_check
          %p478 = pneg %p128
        $region50: #{tpu_custom_call.1} parent=31 // pred_check_branch
          %480 = sbr.rel (%p478) target = $region52
        $region51: #{tpu_custom_call.1} parent=31 // pred_region
          %s481 = smul.u32 16, %s27
          %483 = vsyncadd %s474, 0
          %s484 = smul.addr %s481, 8
          %s485 = scalar_lea.hbm %s3, %s484
          %s486 = sshll.u32 %s477, 4
          %s487 = int_to_ptr.vmem [resolvable:$true] %s486
          %s488 = sshll.u32 %s485, 4
          %s489 = int_to_ptr.hbm [resolvable:$true] %s488
          %494 = dma.vmem_to_hbm [thread:$0]  %s487, 2048, %s489, %s474, 128, 128, 8
        $region52: #{tpu_custom_call.1} parent=31 // pred_fallthru
          _
      $region32: #{tpu_custom_call.1} parent=5 // pred_fallthru
        _
      %p495 = scmp.le.s32.totalorder 2, %s18
      // Predicated region
      $region53: #{tpu_custom_call.1} parent=5 // pred_check
        %p496 = pneg %p495
      $region54: #{tpu_custom_call.1} parent=5 // pred_check_branch
        %498 = sbr.rel (%p496) target = $region56
      $region55: #{tpu_custom_call.1} parent=5 // pred_region
        %s499 = ssub.s32 %s18, 2
        // Predicated region
        $region57: #{tpu_custom_call.1} parent=55 // pred_check
          %p500 = pneg %p134
        $region58: #{tpu_custom_call.1} parent=55 // pred_check_branch
          %502 = sbr.rel (%p500) target = $region60
        $region59: #{tpu_custom_call.1} parent=55 // pred_region
          %s503 = sand.u32 %s119, 1
          %s504 = scalar_lea.sflag [#allocation5], %s503
          %s505 = sand.u32 %s119, 1
          %s506 = smul.addr %s505, 128
          %s507 = scalar_lea.vmem [#allocation8], %s506
          %509 = dma.done %s504, 2048
        $region60: #{tpu_custom_call.1} parent=55 // pred_fallthru
          _
      $region56: #{tpu_custom_call.1} parent=5 // pred_fallthru
        _
    $region6: #{tpu_custom_call.1} parent=1 // loop_footer
      %s22 = sadd.s32 1, %s18
    $region7: #{tpu_custom_call.1} parent=1 // loop_footer_branch
      %17 = sbr.rel target = $region3
    $region8: #{tpu_custom_call.1} parent=1 // loop_exit
      _
    %510 = vsyncpa [#allocation4], 1
    %s511 = scalar_lea.sflag [#allocation4], 1
    %512 = vsyncpa %s511, 1
    %513 = vsyncpa [#allocation7], 1
    %s514 = scalar_lea.sflag [#allocation7], 1
    %515 = vsyncpa %s514, 1
    %516 = vsyncpa [#allocation5], 1
    %s517 = scalar_lea.sflag [#allocation5], 1
    %518 = vsyncpa %s517, 1

</llo_original>
